<compile_context>
chip_gen: v5e
topology: v5e:2x2
jax: 0.10.0
libtpu: 0.0.40
codegen_flags: <defaults>
</compile_context>

<pallas_src>
import functools

import jax
import jax.numpy as jnp
from jax.experimental import pallas as pl
from jax.experimental.pallas import tpu as pltpu


# ---------------------------------------------------------------------------
# VMEM budgeting (generation-aware)
# ---------------------------------------------------------------------------
def _vmem_budget_bytes():
    try:
        cap = int(pltpu.get_tpu_info().vmem_capacity_bytes)
    except Exception:            # interpret mode / older jax: assume smallest (v7x)
        cap = 64 << 20
    # leave ~8 MiB headroom for Pallas-internal scratch / pipeline buffers
    return max(cap - (8 << 20), 32 << 20)


def _vmem_limit(nbytes):
    return int(min(max(int(nbytes), 32 << 20), _vmem_budget_bytes()))


def _cost(flops, bytes_accessed, transcendentals=0):
    return pl.CostEstimate(flops=int(flops), transcendentals=int(transcendentals),
                           bytes_accessed=int(bytes_accessed))


# ---------------------------------------------------------------------------
# Shared in-kernel helper
# ---------------------------------------------------------------------------
def _adj_and_deg(adj_ref, binary_adj):
    """Return (adjacency as MXU operand, f32 row 'degree' (rows,1))."""
    if binary_adj:
        # 0/1 adjacency streamed as int8/bf16 (exact in bf16).  Degree via a
        # tiny MXU ones-dot so accumulation is f32-exact for any N (a bf16
        # lane reduce would round degrees above 256).
        adj = adj_ref[...].astype(jnp.bfloat16)
        ones = jnp.ones((adj.shape[1], 8), jnp.bfloat16)
        deg = jnp.dot(adj, ones, preferred_element_type=jnp.float32)[:, 0:1]
    else:
        # Weighted adjacency: keep f32 and the reference's (adj > 0) count.
        adj = adj_ref[...].astype(jnp.float32)
        deg = jnp.sum((adj > 0.0).astype(jnp.float32), axis=1, keepdims=True)
    return adj, deg


# ---------------------------------------------------------------------------
# Path 1: single fused kernel (adjacency resident in VMEM)
# ---------------------------------------------------------------------------
def _mbs_fused_kernel(x_ref, adj_ref, w1_ref, b1_ref, w2_ref, b2_ref,
                      wfc1_ref, bfc1_ref, wfc_ref, bfc_ref,
                      z_ref, y_ref, *, binary_adj):
    adj, deg = _adj_and_deg(adj_ref, binary_adj)
    dinv = jax.lax.rsqrt(deg)        # (N,1); deg==0 -> NaN rows, exactly like PyTorch

    x = x_ref[...]                   # (N, F) f32
    # gc1: relu(A_tilda @ (x @ W1) + b1), A_tilda folded algebraically.
    t1 = dinv * jnp.dot(x, w1_ref[...], preferred_element_type=jnp.float32)      # (N,10)
    agg1 = jnp.dot(adj, t1.astype(adj.dtype), preferred_element_type=jnp.float32)
    h1 = jnp.maximum(dinv * (agg1 + t1) + b1_ref[...], 0.0)

    # gc2
    t2 = dinv * jnp.dot(h1, w2_ref[...], preferred_element_type=jnp.float32)     # (N,5)
    agg2 = jnp.dot(adj, t2.astype(adj.dtype), preferred_element_type=jnp.float32)
    h2 = dinv * (agg2 + t2) + b2_ref[...]

    # readout + MLP head (tiny; launch-dominated at these sizes)
    z = jnp.maximum(jnp.mean(h2, axis=0, keepdims=True), 0.0)                     # (1,5)
    z_ref[...] = z
    z2 = jnp.maximum(
        jnp.dot(z, wfc1_ref[...], preferred_element_type=jnp.float32) + bfc1_ref[...], 0.0)
    y_ref[...] = jax.nn.sigmoid(
        jnp.dot(z2, wfc_ref[...], preferred_element_type=jnp.float32) + bfc_ref[...])


def mbs_classifier_forward_fused(x, adj, params, *, binary_adj=True):
    """Fused path. x: (N,F), adj: (N,N). Returns (z: (5,), y: (2,))."""
    n, f = x.shape
    x = x.astype(jnp.float32)
    adj_s = adj.astype(jnp.bfloat16 if binary_adj else jnp.float32)
    adj_bytes = n * n * adj_s.dtype.itemsize

    vmem = pl.BlockSpec(memory_space=pltpu.MemorySpace.VMEM)
    z, y = pl.pallas_call(
        functools.partial(_mbs_fused_kernel, binary_adj=binary_adj),
        out_shape=(jax.ShapeDtypeStruct((1, 5), jnp.float32),
                   jax.ShapeDtypeStruct((1, 2), jnp.float32)),
        in_specs=[vmem] * 10,
        out_specs=(vmem, vmem),
        compiler_params=pltpu.CompilerParams(
            vmem_limit_bytes=_vmem_limit(2 * (adj_bytes + n * f * 4 + n * 256) + (8 << 20))),
        cost_estimate=_cost(
            flops=2 * n * n * (8 + 10 + 5) + 2 * n * (f * 10 + 10 * 5),
            bytes_accessed=adj_bytes + n * f * 4 + 1024,
            transcendentals=n + 8),
    )(x, adj_s,
      params["w1"], params["b1"], params["w2"], params["b2"],
      params["wfc1"], params["bfc1"], params["wfc"], params["bfc"])
    return z[0], y[0]


# ---------------------------------------------------------------------------
# Path 2: row-block tiled / HBM-streamed (only for graphs that don't fit VMEM)
# ---------------------------------------------------------------------------
def _prep_kernel(x_ref, adj_ref, w1_ref, packed_ref, *, binary_adj):
    # Per row block: deg -> dinv (degree-0 rows, incl. padding, get dinv=0) and
    # T1 = dinv*(x@W1); packed as [t1(10) | dinv(1) | 0(5)] -> one (bn,16) store.
    _, deg = _adj_and_deg(adj_ref, binary_adj)
    dinv = jnp.where(deg > 0.0, jax.lax.rsqrt(deg), 0.0)                  # (bn, 1)
    t1 = dinv * jnp.dot(x_ref[...], w1_ref[...], preferred_element_type=jnp.float32)
    pad = jnp.zeros((t1.shape[0], 5), jnp.float32)
    packed_ref[...] = jnp.concatenate([t1, dinv, pad], axis=1)


def _gcn1_kernel(adj_ref, packed_ref, w2_ref, b1_ref, t2_ref, *, block_n, binary_adj):
    i = pl.program_id(0)
    row0 = pl.multiple_of(i * block_n, block_n)
    adj = adj_ref[...].astype(jnp.bfloat16 if binary_adj else jnp.float32)   # (bn, Np)
    packed = packed_ref[...]                                # (Np, 16) f32, resident
    t1_mxu = packed[:, 0:10].astype(adj.dtype)              # MXU operand
    blk = packed_ref[pl.ds(row0, block_n), :]               # (bn, 16)
    t1_blk = blk[:, 0:10]
    dinv = blk[:, 10:11]
    agg = jnp.dot(adj, t1_mxu, preferred_element_type=jnp.float32)
    h1 = jnp.maximum(dinv * (agg + t1_blk) + b1_ref[...], 0.0)
    t2_ref[...] = dinv * jnp.dot(h1, w2_ref[...], preferred_element_type=jnp.float32)


def _gcn2_kernel(adj_ref, packed_ref, t2_ref, b2_ref, colsum_ref, *,
                 block_n, binary_adj, n_real):
    i = pl.program_id(0)
    row0 = pl.multiple_of(i * block_n, block_n)
    adj = adj_ref[...].astype(jnp.bfloat16 if binary_adj else jnp.float32)   # (bn, Np)
    t2 = t2_ref[...]                                        # (Np, 5) f32, resident
    t2_blk = t2_ref[pl.ds(row0, block_n), :]                # (bn, 5) identity term
    dinv = packed_ref[...][:, 10:11]                        # (bn, 1) from packed row block
    agg = jnp.dot(adj, t2.astype(adj.dtype), preferred_element_type=jnp.float32)
    h2 = dinv * (agg + t2_blk) + b2_ref[...]
    # Mask padded rows out of the readout (they'd otherwise contribute b2 each).
    rows = row0 + jax.lax.broadcasted_iota(jnp.int32, (block_n, 1), 0)
    h2 = jnp.where(rows < n_real, h2, 0.0)

    @pl.when(i == 0)
    def _():
        colsum_ref[...] = jnp.zeros_like(colsum_ref)
    colsum_ref[...] += jnp.sum(h2, axis=0, keepdims=True)   # h2 never written to HBM


def _pick_block_n(n, adj_itemsize, budget):
    for bn in (512, 256, 128):
        nb = -(-n // bn)
        if nb < 2:                       # keep >=2 row blocks (v7x: one per TensorCore)
            continue
        np_ = nb * bn
        if 2 * bn * np_ * adj_itemsize + np_ * 16 * 4 + (4 << 20) <= budget // 2:
            return bn
    return 128


def mbs_classifier_forward_tiled(x, adj, params, *, binary_adj=True, block_n=None):
    """Streamed path. Handles arbitrary N (pads internally). Returns (z, y)."""
    n, f = x.shape
    budget = _vmem_budget_bytes()
    adj_itemsize = 1 if binary_adj else 4
    if block_n is None:
        block_n = _pick_block_n(n, adj_itemsize, budget)
    nb = -(-n // block_n)
    np_ = nb * block_n
    pad = np_ - n

    x_p = jnp.pad(x.astype(jnp.float32), ((0, pad), (0, 0)))
    adj_p = jnp.pad(adj, ((0, pad), (0, pad)))
    # 0/1 adjacency streamed at 1 byte/element (exact); weighted stays f32.
    # TODO(synk): weighted adjacencies take the slower f32-MXU fallback here.
    adj_s = adj_p.astype(jnp.int8) if binary_adj else adj_p.astype(jnp.float32)
    adj_blk = block_n * np_ * adj_itemsize

    def cparams(resident_bytes, parallel=True):
        return pltpu.CompilerParams(
            dimension_semantics=("parallel",) if parallel else ("arbitrary",),
            vmem_limit_bytes=_vmem_limit(2 * adj_blk + 2 * resident_bytes + (8 << 20)))

    def row_blk(c):
        return pl.BlockSpec((block_n, c), lambda i: (i, 0))

    def full(r, c):
        return pl.BlockSpec((r, c), lambda i: (0, 0))

    # Pass 1: deg/dinv + T1 packed into one (Np, 16) buffer.
    packed = pl.pallas_call(
        functools.partial(_prep_kernel, binary_adj=binary_adj),
        grid=(nb,),
        in_specs=[row_blk(f), row_blk(np_), full(f, 10)],
        out_specs=row_blk(16),
        out_shape=jax.ShapeDtypeStruct((np_, 16), jnp.float32),
        compiler_params=cparams(block_n * (f + 16) * 4),
        cost_estimate=_cost(2 * np_ * np_ * 8 + 2 * np_ * f * 10,
                            np_ * np_ * adj_itemsize + np_ * (f + 16) * 4,
                            transcendentals=np_),
    )(x_p, adj_s, params["w1"])

    # Pass 2: gc1 row blocks -> T2 = dinv * (relu(gc1) @ W2).
    t2 = pl.pallas_call(
        functools.partial(_gcn1_kernel, block_n=block_n, binary_adj=binary_adj),
        grid=(nb,),
        in_specs=[row_blk(np_), full(np_, 16), full(10, 5), full(1, 10)],
        out_specs=row_blk(5),
        out_shape=jax.ShapeDtypeStruct((np_, 5), jnp.float32),
        compiler_params=cparams(np_ * 16 * 4),
        cost_estimate=_cost(2 * np_ * np_ * 10 + 2 * np_ * 10 * 5,
                            np_ * np_ * adj_itemsize + np_ * (16 + 5) * 4),
    )(adj_s, packed, params["w2"], params["b1"])

    # Pass 3: gc2 row blocks reduced in-kernel to the h2 column sum
    # (accumulator output block revisited across the grid -> "arbitrary").
    colsum = pl.pallas_call(
        functools.partial(_gcn2_kernel, block_n=block_n, binary_adj=binary_adj, n_real=n),
        grid=(nb,),
        in_specs=[row_blk(np_), row_blk(16), full(np_, 5), full(1, 5)],
        out_specs=pl.BlockSpec((1, 5), lambda i: (0, 0)),
        out_shape=jax.ShapeDtypeStruct((1, 5), jnp.float32),
        compiler_params=cparams(np_ * 5 * 4, parallel=False),
        cost_estimate=_cost(2 * np_ * np_ * 5,
                            np_ * np_ * adj_itemsize + np_ * (16 + 5) * 4 + 32),
    )(adj_s, packed, t2, params["b2"])

    # Readout + MLP head in the wrapper; mean over the TRUE node count.
    z = jnp.maximum(colsum[0] / float(n), 0.0)
    z2 = jnp.maximum(z @ params["wfc1"] + params["bfc1"][0], 0.0)
    y = jax.nn.sigmoid(z2 @ params["wfc"] + params["bfc"][0])
    return z, y


# ---------------------------------------------------------------------------
# Dispatcher: fused whenever the adjacency fits VMEM, streamed otherwise.
# ---------------------------------------------------------------------------
def mbs_classifier_forward(x, adj, params, *, binary_adj=True, block_n=None,
                           force_tiled=False):
    n, f = x.shape
    adj_itemsize = 2 if binary_adj else 4
    fused_need = n * n * adj_itemsize + n * f * 4 + n * 256 + (2 << 20)
    if not force_tiled and fused_need <= int(0.7 * _vmem_budget_bytes()):
        return mbs_classifier_forward_fused(x, adj, params, binary_adj=binary_adj)
    return mbs_classifier_forward_tiled(x, adj, params, binary_adj=binary_adj,
                                        block_n=block_n)


# ---------------------------------------------------------------------------
# Params / reference / demo
# ---------------------------------------------------------------------------
def init_params(key, nfeat):
    ks = jax.random.split(key, 8)

    def u(k, shape, bound):
        return jax.random.uniform(k, shape, jnp.float32, minval=-bound, maxval=bound)

    s1 = 1.0 / jnp.sqrt(10.0)   # GraphConvolution: stdv = 1/sqrt(out_features)
    s2 = 1.0 / jnp.sqrt(5.0)
    sl = 1.0 / jnp.sqrt(5.0)    # nn.Linear default bound = 1/sqrt(in_features)
    return {
        "w1": u(ks[0], (nfeat, 10), s1), "b1": u(ks[1], (1, 10), s1),
        "w2": u(ks[2], (10, 5), s2),     "b2": u(ks[3], (1, 5), s2),
        # Linear weights stored pre-transposed as (in, out).
        "wfc1": u(ks[4], (5, 5), sl),    "bfc1": u(ks[5], (1, 5), sl),
        "wfc":  u(ks[6], (5, 2), sl),    "bfc":  u(ks[7], (1, 2), sl),
        # TODO(synk): self.fc2 exists in __init__ but is unused in forward; omitted.
    }


def reference_forward(x, adj, p):
    """Pure-JAX reference (materializes A_tilda exactly like the PyTorch code)."""
    adj = adj.astype(jnp.float32)
    deg = jnp.sum((adj > 0.0).astype(jnp.float32), axis=1)
    dinv = deg ** -0.5
    a_tilda = dinv[:, None] * (adj + jnp.eye(adj.shape[0], dtype=jnp.float32)) * dinv[None, :]
    h1 = jnp.maximum(a_tilda @ (x @ p["w1"]) + p["b1"][0], 0.0)
    h2 = a_tilda @ (h1 @ p["w2"]) + p["b2"][0]
    z = jnp.maximum(jnp.mean(h2, axis=0), 0.0)
    z2 = jnp.maximum(z @ p["wfc1"] + p["bfc1"][0], 0.0)
    y = jax.nn.sigmoid(z2 @ p["wfc"] + p["bfc"][0])
    return z, y


def make_graph(key, n, nfeat):
    kx, ka = jax.random.split(key)
    x = jax.random.normal(kx, (n, nfeat), dtype=jnp.float32)
    r = jax.random.uniform(ka, (n, n))
    a = (r > 0.7).astype(jnp.float32)
    a = jnp.maximum(a, a.T)
    idx = jnp.arange(n)
    ring = jnp.zeros((n, n), jnp.float32).at[idx, (idx + 1) % n].set(1.0)
    adj = jnp.clip(a + ring + ring.T, 0.0, 1.0)
    adj = adj * (1.0 - jnp.eye(n, dtype=jnp.float32))   # no self-loops (I added in math)
    return x, adj


if __name__ == "__main__":
    key = jax.random.PRNGKey(0)
    k_small, k_mid, k_p = jax.random.split(key, 3)

    NFEAT = 16
    params = init_params(k_p, NFEAT)

    def check(z_k, y_k, z_r, y_r, what):
        # bf16 adjacency/activation rounding on the MXU -> ~1e-2 relative.
        assert jnp.allclose(z_k, z_r, atol=2e-3, rtol=2e-2), (what, z_k, z_r)
        assert jnp.allclose(y_k, y_r, atol=2e-3, rtol=2e-2), (what, y_k, y_r)

    # 1) Tiny deployed graph -> dispatcher picks the fused single-kernel path.
    x_s, adj_s = make_graph(k_small, 8, NFEAT)
    z, y = mbs_classifier_forward(x_s, adj_s, params)
    jax.block_until_ready((z, y))
    z_r, y_r = reference_forward(x_s, adj_s, params)
    check(z, y, z_r, y_r, "fused-small")

    # 2) Mid-size graph (N=300): adjacency fits VMEM -> still fused (1 adj read).
    x_m, adj_m = make_graph(k_mid, 300, NFEAT)
    z_m, y_m = mbs_classifier_forward(x_m, adj_m, params)
    jax.block_until_ready((z_m, y_m))
    z_mr, y_mr = reference_forward(x_m, adj_m, params)
    check(z_m, y_m, z_mr, y_mr, "fused-mid")

    # 3) Same graph forced onto the streamed path: exercises int8 adj stream,
    #    padding 300 -> 512, two row blocks and the in-kernel column-sum readout.
    z_t, y_t = mbs_classifier_forward(x_m, adj_m, params, force_tiled=True)
    jax.block_until_ready((z_t, y_t))
    check(z_t, y_t, z_mr, y_mr, "tiled")

    print("KERNEL_OK")
</pallas_src>

<mosaic_0001>
module attributes {stable_mosaic.version = 11 : i64} {
  func.func @_mbs_fused_kernel(%arg0: memref<8x16xf32, #tpu.memory_space<vmem>>, %arg1: memref<8x8xbf16, #tpu.memory_space<vmem>>, %arg2: memref<16x10xf32, #tpu.memory_space<vmem>>, %arg3: memref<1x10xf32, #tpu.memory_space<vmem>>, %arg4: memref<10x5xf32, #tpu.memory_space<vmem>>, %arg5: memref<1x5xf32, #tpu.memory_space<vmem>>, %arg6: memref<5x5xf32, #tpu.memory_space<vmem>>, %arg7: memref<1x5xf32, #tpu.memory_space<vmem>>, %arg8: memref<5x2xf32, #tpu.memory_space<vmem>>, %arg9: memref<1x2xf32, #tpu.memory_space<vmem>>, %arg10: memref<1x5xf32, #tpu.memory_space<vmem>>, %arg11: memref<1x2xf32, #tpu.memory_space<vmem>>) attributes {dimension_semantics = [], scalar_prefetch = 0 : i64, scratch_operands = 0 : i64, tpu.core_type = #tpu.core_type<tc>} {
    %c0 = arith.constant 0 : index
    %c0_0 = arith.constant 0 : index
    %0 = vector.load %arg1[%c0, %c0_0] : memref<8x8xbf16, #tpu.memory_space<vmem>>, vector<8x8xbf16>
    %cst = arith.constant 1.000000e+00 : bf16
    %1 = vector.broadcast %cst : bf16 to vector<8x8xbf16>
    %cst_1 = arith.constant dense<0.000000e+00> : vector<8x8xf32>
    %2 = tpu.matmul %0, %1, %cst_1 {dimension_numbers = #tpu.dot_dimension_numbers<[1], [0], [0], [1], [0, 0, 1, 1], [], []>} : vector<8x8xbf16>, vector<8x8xbf16>, vector<8x8xf32> -> vector<8x8xf32>
    %3 = vector.extract_strided_slice %2 {offsets = [0, 0], sizes = [8, 1], strides = [1, 1]} : vector<8x8xf32> to vector<8x1xf32>
    %4 = math.rsqrt %3 : vector<8x1xf32>
    %c0_2 = arith.constant 0 : index
    %c0_3 = arith.constant 0 : index
    %5 = vector.load %arg0[%c0_2, %c0_3] : memref<8x16xf32, #tpu.memory_space<vmem>>, vector<8x16xf32>
    %c0_4 = arith.constant 0 : index
    %c0_5 = arith.constant 0 : index
    %6 = vector.load %arg2[%c0_4, %c0_5] : memref<16x10xf32, #tpu.memory_space<vmem>>, vector<16x10xf32>
    %cst_6 = arith.constant dense<0.000000e+00> : vector<8x10xf32>
    %7 = tpu.matmul %5, %6, %cst_6 {dimension_numbers = #tpu.dot_dimension_numbers<[1], [0], [0], [1], [0, 0, 1, 1], [], []>} : vector<8x16xf32>, vector<16x10xf32>, vector<8x10xf32> -> vector<8x10xf32>
    %8 = vector.broadcast %4 : vector<8x1xf32> to vector<8x10xf32>
    %9 = arith.mulf %8, %7 : vector<8x10xf32>
    %10 = arith.truncf %9 : vector<8x10xf32> to vector<8x10xbf16>
    %cst_7 = arith.constant dense<0.000000e+00> : vector<8x10xf32>
    %11 = tpu.matmul %0, %10, %cst_7 {dimension_numbers = #tpu.dot_dimension_numbers<[1], [0], [0], [1], [0, 0, 1, 1], [], []>} : vector<8x8xbf16>, vector<8x10xbf16>, vector<8x10xf32> -> vector<8x10xf32>
    %12 = arith.addf %11, %9 : vector<8x10xf32>
    %13 = vector.broadcast %4 : vector<8x1xf32> to vector<8x10xf32>
    %14 = arith.mulf %13, %12 : vector<8x10xf32>
    %c0_8 = arith.constant 0 : index
    %c0_9 = arith.constant 0 : index
    %15 = vector.load %arg3[%c0_8, %c0_9] : memref<1x10xf32, #tpu.memory_space<vmem>>, vector<1x10xf32>
    %16 = vector.broadcast %15 : vector<1x10xf32> to vector<8x10xf32>
    %17 = arith.addf %14, %16 : vector<8x10xf32>
    %cst_10 = arith.constant 0.000000e+00 : f32
    %18 = vector.broadcast %cst_10 : f32 to vector<8x10xf32>
    %19 = arith.maximumf %17, %18 : vector<8x10xf32>
    %c0_11 = arith.constant 0 : index
    %c0_12 = arith.constant 0 : index
    %20 = vector.load %arg4[%c0_11, %c0_12] : memref<10x5xf32, #tpu.memory_space<vmem>>, vector<10x5xf32>
    %cst_13 = arith.constant dense<0.000000e+00> : vector<8x5xf32>
    %21 = tpu.matmul %19, %20, %cst_13 {dimension_numbers = #tpu.dot_dimension_numbers<[1], [0], [0], [1], [0, 0, 1, 1], [], []>} : vector<8x10xf32>, vector<10x5xf32>, vector<8x5xf32> -> vector<8x5xf32>
    %22 = vector.broadcast %4 : vector<8x1xf32> to vector<8x5xf32>
    %23 = arith.mulf %22, %21 : vector<8x5xf32>
    %24 = arith.truncf %23 : vector<8x5xf32> to vector<8x5xbf16>
    %cst_14 = arith.constant dense<0.000000e+00> : vector<8x5xf32>
    %25 = tpu.matmul %0, %24, %cst_14 {dimension_numbers = #tpu.dot_dimension_numbers<[1], [0], [0], [1], [0, 0, 1, 1], [], []>} : vector<8x8xbf16>, vector<8x5xbf16>, vector<8x5xf32> -> vector<8x5xf32>
    %26 = arith.addf %25, %23 : vector<8x5xf32>
    %27 = vector.broadcast %4 : vector<8x1xf32> to vector<8x5xf32>
    %28 = arith.mulf %27, %26 : vector<8x5xf32>
    %c0_15 = arith.constant 0 : index
    %c0_16 = arith.constant 0 : index
    %29 = vector.load %arg5[%c0_15, %c0_16] : memref<1x5xf32, #tpu.memory_space<vmem>>, vector<1x5xf32>
    %30 = vector.broadcast %29 : vector<1x5xf32> to vector<8x5xf32>
    %31 = arith.addf %28, %30 : vector<8x5xf32>
    %cst_17 = arith.constant dense<0.000000e+00> : vector<5xf32>
    %32 = vector.multi_reduction <add>, %31, %cst_17 [0] : vector<8x5xf32> to vector<5xf32>
    %33 = vector.shape_cast %32 : vector<5xf32> to vector<1x5xf32>
    %cst_18 = arith.constant 8.000000e+00 : f32
    %34 = vector.broadcast %cst_18 : f32 to vector<1x5xf32>
    %35 = arith.divf %33, %34 : vector<1x5xf32>
    %cst_19 = arith.constant 0.000000e+00 : f32
    %36 = vector.broadcast %cst_19 : f32 to vector<1x5xf32>
    %37 = arith.maximumf %35, %36 : vector<1x5xf32>
    %c0_20 = arith.constant 0 : index
    %c0_21 = arith.constant 0 : index
    %38 = vector.load %arg10[%c0_20, %c0_21] : memref<1x5xf32, #tpu.memory_space<vmem>>, vector<1x5xf32>
    tpu.vector_store %arg10[%c0_20, %c0_21], %37 {strides = array<i32>} : memref<1x5xf32, #tpu.memory_space<vmem>>, vector<1x5xf32>,
    %c0_22 = arith.constant 0 : index
    %c0_23 = arith.constant 0 : index
    %39 = vector.load %arg6[%c0_22, %c0_23] : memref<5x5xf32, #tpu.memory_space<vmem>>, vector<5x5xf32>
    %cst_24 = arith.constant dense<0.000000e+00> : vector<1x5xf32>
    %40 = tpu.matmul %37, %39, %cst_24 {dimension_numbers = #tpu.dot_dimension_numbers<[1], [0], [0], [1], [0, 0, 1, 1], [], []>} : vector<1x5xf32>, vector<5x5xf32>, vector<1x5xf32> -> vector<1x5xf32>
    %c0_25 = arith.constant 0 : index
    %c0_26 = arith.constant 0 : index
    %41 = vector.load %arg7[%c0_25, %c0_26] : memref<1x5xf32, #tpu.memory_space<vmem>>, vector<1x5xf32>
    %42 = arith.addf %40, %41 : vector<1x5xf32>
    %cst_27 = arith.constant 0.000000e+00 : f32
    %43 = vector.broadcast %cst_27 : f32 to vector<1x5xf32>
    %44 = arith.maximumf %42, %43 : vector<1x5xf32>
    %c0_28 = arith.constant 0 : index
    %c0_29 = arith.constant 0 : index
    %45 = vector.load %arg8[%c0_28, %c0_29] : memref<5x2xf32, #tpu.memory_space<vmem>>, vector<5x2xf32>
    %cst_30 = arith.constant dense<0.000000e+00> : vector<1x2xf32>
    %46 = tpu.matmul %44, %45, %cst_30 {dimension_numbers = #tpu.dot_dimension_numbers<[1], [0], [0], [1], [0, 0, 1, 1], [], []>} : vector<1x5xf32>, vector<5x2xf32>, vector<1x2xf32> -> vector<1x2xf32>
    %c0_31 = arith.constant 0 : index
    %c0_32 = arith.constant 0 : index
    %47 = vector.load %arg9[%c0_31, %c0_32] : memref<1x2xf32, #tpu.memory_space<vmem>>, vector<1x2xf32>
    %48 = arith.addf %46, %47 : vector<1x2xf32>
    %49 = arith.negf %48 : vector<1x2xf32>
    %50 = math.exp %49 : vector<1x2xf32>
    %cst_33 = arith.constant 1.000000e+00 : f32
    %51 = vector.broadcast %cst_33 : f32 to vector<1x2xf32>
    %52 = arith.addf %51, %50 : vector<1x2xf32>
    %53 = arith.divf %51, %52 : vector<1x2xf32>
    %c0_34 = arith.constant 0 : index
    %c0_35 = arith.constant 0 : index
    %54 = vector.load %arg11[%c0_34, %c0_35] : memref<1x2xf32, #tpu.memory_space<vmem>>, vector<1x2xf32>
    tpu.vector_store %arg11[%c0_34, %c0_35], %53 {strides = array<i32>} : memref<1x2xf32, #tpu.memory_space<vmem>>, vector<1x2xf32>,
    return
  }
}

</mosaic_0001>

<llo_original>
// kernel: tpu_custom_call.1
$region0: #{tpu_custom_call.1}
  #allocation0 [shape = 'u32[]', space=smem, size = 0x4, offset = 0x4, fixed_abs, tag = 'smem constant byte address 0x4 - core index']
  #allocation1 [shape = 'u32[72,128]{1,0:T(1,128)}', space=vmem, size = 0x9000, scoped, tag = 'internal scratch']
  %s0 = inlined_call_operand.vmem [shape: f32[8,16], index: 0, kind: input, shape index: {}]
  %s1 = inlined_call_operand.vmem [shape: bf16[8,8], index: 1, kind: input, shape index: {}]
  %s2 = inlined_call_operand.vmem [shape: f32[16,10], index: 2, kind: input, shape index: {}]
  %s3 = inlined_call_operand.hbm [shape: f32[1,10], index: 3, kind: input, shape index: {}]
  %s4 = inlined_call_operand.vmem [shape: f32[10,5], index: 4, kind: input, shape index: {}]
  %s5 = inlined_call_operand.hbm [shape: f32[1,5], index: 5, kind: input, shape index: {}]
  %s6 = inlined_call_operand.hbm [shape: f32[5,5], index: 6, kind: input, shape index: {}]
  %s7 = inlined_call_operand.vmem [shape: f32[1,5], index: 7, kind: input, shape index: {}]
  %s8 = inlined_call_operand.vmem [shape: f32[5,2], index: 8, kind: input, shape index: {}]
  %s9 = inlined_call_operand.vmem [shape: f32[1,2], index: 9, kind: input, shape index: {}]
  %s10 = inlined_call_operand.hbm [shape: f32[1,5], index: 10, kind: output, shape index: {0}]
  %s11 = inlined_call_operand.hbm [shape: f32[1,2], index: 11, kind: output, shape index: {1}]
  %12 = xla_tuple %s10, %s11
  %s13 = sld [smem:[#allocation0]]
  $region70: #{tpu_custom_call.1} parent=0
    _
  %s15 = ssub.s32 1, %s13
  %s16 = scalar_select 0, %s15, %s13
  $region1: #{tpu_custom_call.1} parent=0
    #allocation2 [shape = 'u8[512]{0}', space=vmem, size = 0x400, scoped, tag = 'input window, operand 3, single buffered']
    #allocation3 [shape = 's32[1]{0}', space=sflag, size = 0x4, scoped, tag = 'scoped memory for tpu_custom_call.1']
    #allocation4 [shape = 's32[1]{0}', space=sflag, size = 0x4, scoped, tag = 'scoped memory for tpu_custom_call.1']
    #allocation5 [shape = 'u8[512]{0}', space=vmem, size = 0x400, scoped, tag = 'input window, operand 5, single buffered']
    #allocation6 [shape = 's32[1]{0}', space=sflag, size = 0x4, scoped, tag = 'scoped memory for tpu_custom_call.1']
    #allocation7 [shape = 'u8[4096]{0}', space=vmem, size = 0x1000, scoped, tag = 'input window, operand 6, single buffered']
    #allocation8 [shape = 'u8[512]{0}', space=vmem, size = 0x400, scoped, tag = 'output window, operand 0, single buffered']
    #allocation9 [shape = 'u8[512]{0}', space=vmem, size = 0x400, scoped, tag = 'output window, operand 1, single buffered']
    #allocation10 [shape = 's32[1]{0}', space=sflag, size = 0x4, scoped, tag = 'scoped memory for tpu_custom_call.1']
    %17 = vsyncpa [#allocation3], 0
    %18 = vsyncpa [#allocation6], 0
    %19 = vsyncpa [#allocation4], 0
    %20 = vsyncpa [#allocation10], 0
    // Predicated region
    $region2: #{tpu_custom_call.1} parent=1 // pred_check
      _
    $region3: #{tpu_custom_call.1} parent=1 // pred_check_branch
      %22 = sbr.rel (0) target = $region5
    $region4: #{tpu_custom_call.1} parent=1 // pred_region
      _
    $region5: #{tpu_custom_call.1} parent=1 // pred_fallthru
      _
    // Predicated region
    $region6: #{tpu_custom_call.1} parent=1 // pred_check
      _
    $region7: #{tpu_custom_call.1} parent=1 // pred_check_branch
      %24 = sbr.rel (0) target = $region9
    $region8: #{tpu_custom_call.1} parent=1 // pred_region
      _
    $region9: #{tpu_custom_call.1} parent=1 // pred_fallthru
      _
    // Predicated region
    $region10: #{tpu_custom_call.1} parent=1 // pred_check
      _
    $region11: #{tpu_custom_call.1} parent=1 // pred_check_branch
      %26 = sbr.rel (0) target = $region13
    $region12: #{tpu_custom_call.1} parent=1 // pred_region
      _
    $region13: #{tpu_custom_call.1} parent=1 // pred_fallthru
      _
    // Predicated region
    $region14: #{tpu_custom_call.1} parent=1 // pred_check
      _
    $region15: #{tpu_custom_call.1} parent=1 // pred_check_branch
      %28 = sbr.rel (0) target = $region17
    $region16: #{tpu_custom_call.1} parent=1 // pred_region
      %30 = vsyncadd [#allocation3], 0
      %s32 = sshll.u32 %s3, 4
      %s33 = int_to_ptr.hbm [resolvable:$true] %s32
      %s34 = sshll.u32 [#allocation2], 4
      %s35 = int_to_ptr.vmem [resolvable:$true] %s34
      %37 = dma.hbm_to_vmem [thread:$0]  %s33, 16, %s35, [#allocation3]
    $region17: #{tpu_custom_call.1} parent=1 // pred_fallthru
      _
    // Predicated region
    $region18: #{tpu_custom_call.1} parent=1 // pred_check
      _
    $region19: #{tpu_custom_call.1} parent=1 // pred_check_branch
      %39 = sbr.rel (0) target = $region21
    $region20: #{tpu_custom_call.1} parent=1 // pred_region
      _
    $region21: #{tpu_custom_call.1} parent=1 // pred_fallthru
      _
    // Predicated region
    $region22: #{tpu_custom_call.1} parent=1 // pred_check
      _
    $region23: #{tpu_custom_call.1} parent=1 // pred_check_branch
      %41 = sbr.rel (0) target = $region25
    $region24: #{tpu_custom_call.1} parent=1 // pred_region
      %43 = vsyncadd [#allocation6], 0
      %s45 = sshll.u32 %s5, 4
      %s46 = int_to_ptr.hbm [resolvable:$true] %s45
      %s47 = sshll.u32 [#allocation5], 4
      %s48 = int_to_ptr.vmem [resolvable:$true] %s47
      %50 = dma.hbm_to_vmem [thread:$0]  %s46, 16, %s48, [#allocation6]
    $region25: #{tpu_custom_call.1} parent=1 // pred_fallthru
      _
    // Predicated region
    $region26: #{tpu_custom_call.1} parent=1 // pred_check
      _
    $region27: #{tpu_custom_call.1} parent=1 // pred_check_branch
      %52 = sbr.rel (0) target = $region29
    $region28: #{tpu_custom_call.1} parent=1 // pred_region
      %54 = vsyncadd [#allocation6], 0
      %s56 = sshll.u32 %s6, 4
      %s57 = int_to_ptr.hbm [resolvable:$true] %s56
      %s58 = sshll.u32 [#allocation7], 4
      %s59 = int_to_ptr.vmem [resolvable:$true] %s58
      %61 = dma.hbm_to_vmem [thread:$0]  %s57, 128, %s59, [#allocation6]
    $region29: #{tpu_custom_call.1} parent=1 // pred_fallthru
      _
    // Predicated region
    $region30: #{tpu_custom_call.1} parent=1 // pred_check
      _
    $region31: #{tpu_custom_call.1} parent=1 // pred_check_branch
      %63 = sbr.rel (0) target = $region33
    $region32: #{tpu_custom_call.1} parent=1 // pred_region
      _
    $region33: #{tpu_custom_call.1} parent=1 // pred_fallthru
      _
    // Predicated region
    $region34: #{tpu_custom_call.1} parent=1 // pred_check
      _
    $region35: #{tpu_custom_call.1} parent=1 // pred_check_branch
      %65 = sbr.rel (0) target = $region37
    $region36: #{tpu_custom_call.1} parent=1 // pred_region
      _
    $region37: #{tpu_custom_call.1} parent=1 // pred_fallthru
      _
    // Predicated region
    $region38: #{tpu_custom_call.1} parent=1 // pred_check
      _
    $region39: #{tpu_custom_call.1} parent=1 // pred_check_branch
      %67 = sbr.rel (0) target = $region41
    $region40: #{tpu_custom_call.1} parent=1 // pred_region
      _
    $region41: #{tpu_custom_call.1} parent=1 // pred_fallthru
      _
    // Predicated region
    $region42: #{tpu_custom_call.1} parent=1 // pred_check
      _
    $region43: #{tpu_custom_call.1} parent=1 // pred_check_branch
      %69 = sbr.rel (0) target = $region45
    $region44: #{tpu_custom_call.1} parent=1 // pred_region
      %71 = dma.done [#allocation3], 16
    $region45: #{tpu_custom_call.1} parent=1 // pred_fallthru
      _
    // Predicated region
    $region46: #{tpu_custom_call.1} parent=1 // pred_check
      _
    $region47: #{tpu_custom_call.1} parent=1 // pred_check_branch
      %73 = sbr.rel (0) target = $region49
    $region48: #{tpu_custom_call.1} parent=1 // pred_region
      %75 = dma.done [#allocation6], 16
    $region49: #{tpu_custom_call.1} parent=1 // pred_fallthru
      _
    // Predicated region
    $region50: #{tpu_custom_call.1} parent=1 // pred_check
      _
    $region51: #{tpu_custom_call.1} parent=1 // pred_check_branch
      %77 = sbr.rel (0) target = $region53
    $region52: #{tpu_custom_call.1} parent=1 // pred_region
      %79 = dma.done [#allocation6], 128
    $region53: #{tpu_custom_call.1} parent=1 // pred_fallthru
      _
    %v82 = vld [vmem:[%s1] sm:$0xf]
    %vm83 = vcmask 64512
    %v85 = vsel %vm83, %v82, 0
    %vm87 = vcmask 1043456
    %v89 = vsel %vm87, 1065369472, 0
    %91 = vmatpush.bf16.msra.mxu0 0
    %92 = vmatpush.bf16.msra.mxu0 0
    %93 = vmatpush.bf16.msra.mxu0 0
    %94 = vmatpush.bf16.msra.mxu0 0
    %95 = vmatpush.bf16.msra.mxu0 0
    %96 = vmatpush.bf16.msra.mxu0 0
    %97 = vmatpush.bf16.msra.mxu0 0
    %98 = vmatpush.bf16.msra.mxu0 %v89
    %99 = vmatmul.bf16.gmra.mxu0 %v85
    %v100 = vpop.f32.mrf.mxu0
    %v101 = vadd.f32 0.0, %v100
    %v102 = vpop.f32.mrf.mxu0
    %103 = vdwg.mxu0
    %v104 = vrsqrt.pop %v101
    %v105 = vmul.f32 %v104, %v101
    %v106 = vmul.f32 %v105, %v104
    %v107 = vmul.f32 0.5, %v106
    %v108 = vsub.f32 1.5, %v107
    %v109 = vmul.f32 %v104, %v108
    %vm110 = vweird.f32 %v101
    %vm111 = vweird.f32 %v104
    %vm112 = vmor %vm110, %vm111
    %v113 = vsel %vm112, %v104, %v109
    %v114 = vld [vmem:[%s0] sm:$0xff]
    %v115 = vld [vmem:[%s2] sm:$0xff]
    %v116 = vld [vmem:[%s2 + $0x8] sm:$0xff]
    %vm117 = vcmask 130048
    %v119 = vsel %vm117, %v114, 0
    %121 = vmatpush.msra.mxu0 0.0
    %122 = vmatpush.msra.mxu0 0.0
    %123 = vmatpush.msra.mxu0 0.0
    %124 = vmatpush.msra.mxu0 0.0
    %125 = vmatpush.msra.mxu0 0.0
    %126 = vmatpush.msra.mxu0 0.0
    %127 = vmatpush.msra.mxu0 0.0
    %128 = vmatpush.msra.mxu0 0.0
    %129 = vmatpush.msra.mxu0 0.0
    %130 = vmatpush.msra.mxu0 0.0
    %131 = vmatpush.msra.mxu0 0.0
    %132 = vmatpush.msra.mxu0 0.0
    %133 = vmatpush.msra.mxu0 0.0
    %134 = vmatpush.msra.mxu0 0.0
    %135 = vmatpush.msra.mxu0 %v116
    %136 = vmatpush.msra.mxu0 %v115
    %137 = vmatmul.f32.gmra.mxu0 %v119
    %v138 = vpop.f32.mrf.mxu0
    %v139 = vadd.f32 0.0, %v138
    %140 = vdwg.mxu0
    %142 = vset.pattern.permute.xlu0 0
    %143 = vperm.xlu0 %142, %v113
    %v144 = vpop.permute.xlu0 %143
    %v146 = vmul.f32 %v144, %v139
    %v147 = vpack.c.bf16 %v146, %v146
    %v149 = vsel %vm87, %v147, 0
    %151 = vmatpush.bf16.msra.mxu0 0
    %152 = vmatpush.bf16.msra.mxu0 0
    %153 = vmatpush.bf16.msra.mxu0 0
    %154 = vmatpush.bf16.msra.mxu0 0
    %155 = vmatpush.bf16.msra.mxu0 0
    %156 = vmatpush.bf16.msra.mxu0 0
    %157 = vmatpush.bf16.msra.mxu0 0
    %158 = vmatpush.bf16.msra.mxu0 %v149
    %159 = vmatmul.bf16.gmra.mxu0 %v85
    %v160 = vpop.f32.mrf.mxu0
    %v161 = vadd.f32 %v146, %v160
    %v162 = vpop.f32.mrf.mxu0
    %163 = vdwg.mxu0
    %v164 = vmul.f32 %v144, %v161
    %v165 = vld [vmem:[#allocation2] sm:$0x1]
    %v167 = vperm.slane %v165, 0
    %v169 = vadd.f32 %v164, %v167
    %v170 = vmax.f32 %v169, 0.0
    %v171 = vld [vmem:[%s4] sm:$0xff]
    %v172 = vld [vmem:[%s4 + $0x8] sm:$0x3]
    %vm173 = vcmask 80896
    %v175 = vsel %vm173, %v170, 0
    %vm177 = vcmask 1041408
    %v179 = vsel %vm177, %v172, 0
    %181 = vmatpush.msra.mxu0 0.0
    %182 = vmatpush.msra.mxu0 0.0
    %183 = vmatpush.msra.mxu0 0.0
    %184 = vmatpush.msra.mxu0 0.0
    %185 = vmatpush.msra.mxu0 0.0
    %186 = vmatpush.msra.mxu0 0.0
    %187 = vmatpush.msra.mxu0 0.0
    %188 = vmatpush.msra.mxu0 0.0
    %189 = vmatpush.msra.mxu0 0.0
    %190 = vmatpush.msra.mxu0 0.0
    %191 = vmatpush.msra.mxu0 0.0
    %192 = vmatpush.msra.mxu0 0.0
    %193 = vmatpush.msra.mxu0 0.0
    %194 = vmatpush.msra.mxu0 0.0
    %195 = vmatpush.msra.mxu0 %v179
    %196 = vmatpush.msra.mxu0 %v171
    %197 = vmatmul.f32.gmra.mxu0 %v175
    %v198 = vpop.f32.mrf.mxu0
    %v199 = vadd.f32 0.0, %v198
    %200 = vdwg.mxu0
    %v201 = vmul.f32 %v144, %v199
    %v202 = vpack.c.bf16 %v201, %v201
    %v204 = vsel %vm87, %v202, 0
    %206 = vmatpush.bf16.msra.mxu0 0
    %207 = vmatpush.bf16.msra.mxu0 0
    %208 = vmatpush.bf16.msra.mxu0 0
    %209 = vmatpush.bf16.msra.mxu0 0
    %210 = vmatpush.bf16.msra.mxu0 0
    %211 = vmatpush.bf16.msra.mxu0 0
    %212 = vmatpush.bf16.msra.mxu0 0
    %213 = vmatpush.bf16.msra.mxu0 %v204
    %214 = vmatmul.bf16.gmra.mxu0 %v85
    %v215 = vpop.f32.mrf.mxu0
    %v216 = vadd.f32 %v201, %v215
    %v217 = vpop.f32.mrf.mxu0
    %218 = vdwg.mxu0
    %v219 = vmul.f32 %v144, %v216
    %v220 = vld [vmem:[#allocation5] sm:$0x1]
    %v222 = vperm.slane %v220, 0
    %v224 = vadd.f32 %v219, %v222
    %vm225 = vcmask 39936
    %v226 = vsel %vm225, %v224, 0.0
    %v227 = vrot.slane %v226, 4
    %v228 = vadd.f32 %v226, %v227
    %v229 = vrot.slane %v228, 2
    %v230 = vadd.f32 %v228, %v229
    %v231 = vrot.slane %v230, 1
    %v232 = vadd.f32 %v230, %v231
    %v233 = vrcp.pop 8.0
    %v234 = vmul.f32 8.0, %v233
    %v235 = vsub.f32 1.0, %v234
    %v236 = vmul.f32 %v233, %v235
    %v237 = vadd.f32 %v233, %v236
    %vm238 = vweird.f32 %v233
    %v239 = vsel %vm238, %v233, %v237
    %v240 = vmul.f32 %v232, %v239
    %v241 = vmax.f32 %v240, 0.0
    %vm242 = vcmask 32768
    %243 = vst.msk [vmem:[#allocation8] sm:$0x1] %vm242, %v241
    %v244 = vld [vmem:[#allocation7] sm:$0x1f]
    %v245 = vld [vmem:[%s7] sm:$0x1]
    %v247 = vsel %vm225, %v241, 0
    %vm249 = vcmask 1044480
    %v251 = vsel %vm249, %v244, 0
    %253 = vmatpush.msra.mxu0 0.0
    %254 = vmatpush.msra.mxu0 0.0
    %255 = vmatpush.msra.mxu0 0.0
    %256 = vmatpush.msra.mxu0 0.0
    %257 = vmatpush.msra.mxu0 0.0
    %258 = vmatpush.msra.mxu0 0.0
    %259 = vmatpush.msra.mxu0 0.0
    %260 = vmatpush.msra.mxu0 0.0
    %261 = vmatpush.msra.mxu0 0.0
    %262 = vmatpush.msra.mxu0 0.0
    %263 = vmatpush.msra.mxu0 0.0
    %264 = vmatpush.msra.mxu0 0.0
    %265 = vmatpush.msra.mxu0 0.0
    %266 = vmatpush.msra.mxu0 0.0
    %267 = vmatpush.msra.mxu0 0.0
    %268 = vmatpush.msra.mxu0 %v251
    %269 = vmatmul.f32.gmra.mxu0 %v247
    %v270 = vpop.f32.mrf.mxu0
    %v271 = vadd.f32 %v245, %v270
    %272 = vdwg.mxu0
    %v273 = vmax.f32 %v271, 0.0
    %v274 = vld [vmem:[%s8] sm:$0x1f]
    %v275 = vld [vmem:[%s9] sm:$0x1]
    %v277 = vsel %vm225, %v273, 0
    %v280 = vsel %vm249, %v274, 0
    %282 = vmatpush.msra.mxu0 0.0
    %283 = vmatpush.msra.mxu0 0.0
    %284 = vmatpush.msra.mxu0 0.0
    %285 = vmatpush.msra.mxu0 0.0
    %286 = vmatpush.msra.mxu0 0.0
    %287 = vmatpush.msra.mxu0 0.0
    %288 = vmatpush.msra.mxu0 0.0
    %289 = vmatpush.msra.mxu0 0.0
    %290 = vmatpush.msra.mxu0 0.0
    %291 = vmatpush.msra.mxu0 0.0
    %292 = vmatpush.msra.mxu0 0.0
    %293 = vmatpush.msra.mxu0 0.0
    %294 = vmatpush.msra.mxu0 0.0
    %295 = vmatpush.msra.mxu0 0.0
    %296 = vmatpush.msra.mxu0 0.0
    %297 = vmatpush.msra.mxu0 %v280
    %298 = vmatmul.f32.gmra.mxu0 %v277
    %v299 = vpop.f32.mrf.mxu0
    %v300 = vadd.f32 %v275, %v299
    %301 = vdwg.mxu0
    %v302 = vxor.u32 %v300, 2147483648
    %v303 = vmul.f32 %v302, 1.442695
    %v304 = vpow.pop %v303
    %v305 = vadd.f32 %v304, 1.0
    %v306 = vrcp.pop %v305
    %v307 = vmul.f32 %v305, %v306
    %v308 = vsub.f32 1.0, %v307
    %v309 = vmul.f32 %v306, %v308
    %v310 = vadd.f32 %v306, %v309
    %vm311 = vweird.f32 %v305
    %vm312 = vweird.f32 %v306
    %vm313 = vmor %vm311, %vm312
    %v314 = vsel %vm313, %v306, %v310
    %v315 = vand.u32 2147483647, %v305
    %vm316 = vcmp.eq.f32.partialorder %v315, 8.507059e+37
    %v317 = vand.u32 %v305, 2147483648
    %v318 = vor.u32 1.1754944e-38, %v317
    %v319 = vsel %vm316, %v318, %v314
    %v320 = vmul.f32 1.0, %v319
    %vm321 = vcmask 8192
    %322 = vst.msk [vmem:[#allocation9] sm:$0x1] %vm321, %v320
    // Predicated region
    $region54: #{tpu_custom_call.1} parent=1 // pred_check
      _
    $region55: #{tpu_custom_call.1} parent=1 // pred_check_branch
      %324 = sbr.rel (0) target = $region57
    $region56: #{tpu_custom_call.1} parent=1 // pred_region
      %326 = vsyncadd [#allocation4], 0
      %s328 = sshll.u32 [#allocation8], 4
      %s329 = int_to_ptr.vmem [resolvable:$true] %s328
      %s330 = sshll.u32 %s10, 4
      %s331 = int_to_ptr.hbm [resolvable:$true] %s330
      %333 = dma.vmem_to_hbm [thread:$0]  %s329, 16, %s331, [#allocation4]
    $region57: #{tpu_custom_call.1} parent=1 // pred_fallthru
      _
    // Predicated region
    $region58: #{tpu_custom_call.1} parent=1 // pred_check
      _
    $region59: #{tpu_custom_call.1} parent=1 // pred_check_branch
      %335 = sbr.rel (0) target = $region61
    $region60: #{tpu_custom_call.1} parent=1 // pred_region
      %337 = vsyncadd [#allocation10], 0
      %s339 = sshll.u32 [#allocation9], 4
      %s340 = int_to_ptr.vmem [resolvable:$true] %s339
      %s341 = sshll.u32 %s11, 4
      %s342 = int_to_ptr.hbm [resolvable:$true] %s341
      %344 = dma.vmem_to_hbm [thread:$0]  %s340, 16, %s342, [#allocation10]
    $region61: #{tpu_custom_call.1} parent=1 // pred_fallthru
      _
    // Predicated region
    $region62: #{tpu_custom_call.1} parent=1 // pred_check
      _
    $region63: #{tpu_custom_call.1} parent=1 // pred_check_branch
      %346 = sbr.rel (0) target = $region65
    $region64: #{tpu_custom_call.1} parent=1 // pred_region
      %348 = dma.done [#allocation4], 16
    $region65: #{tpu_custom_call.1} parent=1 // pred_fallthru
      _
    // Predicated region
    $region66: #{tpu_custom_call.1} parent=1 // pred_check
      _
    $region67: #{tpu_custom_call.1} parent=1 // pred_check_branch
      %350 = sbr.rel (0) target = $region69
    $region68: #{tpu_custom_call.1} parent=1 // pred_region
      %352 = dma.done [#allocation10], 16
    $region69: #{tpu_custom_call.1} parent=1 // pred_fallthru
      _
    %353 = vsyncpa [#allocation3], 1
    %354 = vsyncpa [#allocation6], 1
    %355 = vsyncpa [#allocation4], 1
    %356 = vsyncpa [#allocation10], 1

</llo_original>
